<compile_context>
chip_gen: v7x
topology: tpu7x:2x2x1
jax: 0.10.0
libtpu: 0.0.40
codegen_flags: <defaults>
</compile_context>

<pallas_src>
import functools
import math

import jax
import jax.numpy as jnp
from jax.experimental import pallas as pl
from jax.experimental.pallas import tpu as pltpu


def _round_up(x, m):
    return (x + m - 1) // m * m


try:
    _DEVICE_KIND = jax.devices()[0].device_kind.lower()
except Exception:  # pragma: no cover
    _DEVICE_KIND = ""
# v5-class MXU is 128x128 -> 128-wide N tiles already saturate it; v6e/v7x prefer 256.
_TN_BIG = 128 if "v5" in _DEVICE_KIND else 256

_ACC_CAP = 32768          # f32 elements of the local tap accumulator (~128 KiB)
_CONV_VMEM_LIMIT = 48 * 1024 * 1024


def _pick_tn(cout):
    if cout <= 128:
        return cout                      # full (possibly <128) lane dim: legal full-dim block
    if cout % _TN_BIG == 0:
        return _TN_BIG
    return 128 if cout % 128 == 0 else cout


def _pick_th(r, q, tn, cap=_ACC_CAP):
    best = 1
    for d in range(1, r + 1):
        if r % d == 0 and d * q * tn <= cap:
            best = d
    return best


# ----------------------------------------------------------------------------
# Pallas kernel 1: tap-decomposed convolution with fused BN-statistics epilogue
# ----------------------------------------------------------------------------
def _conv_tap_kernel(planes_ref, w_ref, y_ref, ps_ref, pq_ref, *,
                     taps, th, q, plane_rows, transpose_mode, ss_axis, m_axis):
    # planes_ref: (1, PR, PC, C)  bf16   -- resident input slab of one batch element
    # w_ref     : (T, C, tn)      bf16   -- per-tap weight matrices for this phase/col
    # y_ref     : (th*q, tn)      bf16   -- output tile (written once)
    # ps_ref/pq_ref: (1, 8, tn)   f32    -- per-tile channel sum / sum-of-squares
    m = pl.program_id(m_axis)
    r0 = m * th
    if transpose_mode:
        ss = pl.program_id(ss_axis)
        sy = ss // 2
        sx = ss - 2 * sy
    acc = None
    for t, tap in enumerate(taps):
        if transpose_mode:
            ty, tx = tap
            row0 = sx * plane_rows + sy + r0 + ty     # dynamic row start (supported)
            col0 = tx                                 # static column start
        else:
            p, dy, dx = tap
            row0 = p * plane_rows + r0 + dy
            col0 = dx
        a = planes_ref[0, pl.ds(row0, th), pl.ds(col0, q), :]      # (th, q, C)
        a2 = a.reshape(th * q, a.shape[-1])
        contrib = jnp.dot(a2, w_ref[t], preferred_element_type=jnp.float32)
        acc = contrib if acc is None else acc + contrib
    # BN statistics from the f32 accumulator (before the bf16 downcast).
    ps_ref[...] = jnp.broadcast_to(jnp.sum(acc, axis=0, keepdims=True), ps_ref.shape)
    pq_ref[...] = jnp.broadcast_to(jnp.sum(acc * acc, axis=0, keepdims=True), pq_ref.shape)
    y_ref[...] = acc.astype(y_ref.dtype)


def _conv_taps_call(planes, wstack, taps, *, n, ns, r, q, cout,
                    transpose_mode, plane_rows):
    """planes: (n, PR, PC, C) bf16 ; wstack: (ns*T, C, cout) bf16.
    Returns y2d (n*ns*r*q, cout) bf16 plus per-tile BN-stat partials (f32)."""
    nt = len(taps)
    c = planes.shape[-1]
    pr_total, pc_total = planes.shape[1], planes.shape[2]
    assert wstack.shape == (ns * nt, c, cout)

    tn = _pick_tn(cout)
    # Cap the per-step weight block at ~4 MiB (keeps double-buffered weights modest).
    while tn > 128 and nt * c * tn * 2 > (4 << 20):
        tn //= 2
    th = _pick_th(r, q, tn)
    mt = r // th
    jt = cout // tn

    # Grid order: stream whichever operand is cheaper to re-fetch.
    w_bytes = ns * nt * c * cout * 2
    p_bytes = pr_total * pc_total * c * 2          # raw slab bytes per batch element
    cost_batch_major = n * mt * w_bytes + n * p_bytes
    cost_weight_major = w_bytes + ns * jt * n * p_bytes
    weight_major = cost_weight_major < cost_batch_major

    kernel = functools.partial(
        _conv_tap_kernel, taps=tuple(taps), th=th, q=q, plane_rows=plane_rows,
        transpose_mode=transpose_mode,
        ss_axis=0 if weight_major else 1,
        m_axis=3 if weight_major else 2)

    if weight_major:
        grid = (ns, jt, n, mt)
        planes_map = lambda s, j, i, m: (i, 0, 0, 0)
        w_map = lambda s, j, i, m: (s, 0, j)
        y_map = lambda s, j, i, m: ((i * ns + s) * mt + m, j)
        st_map = lambda s, j, i, m: ((i * ns + s) * mt + m, 0, j)
    else:
        grid = (n, ns, mt, jt)
        planes_map = lambda i, s, m, j: (i, 0, 0, 0)
        w_map = lambda i, s, m, j: (s, 0, j)
        y_map = lambda i, s, m, j: ((i * ns + s) * mt + m, j)
        st_map = lambda i, s, m, j: ((i * ns + s) * mt + m, 0, j)

    y, ps, pq = pl.pallas_call(
        kernel,
        out_shape=(jax.ShapeDtypeStruct((n * ns * r * q, cout), jnp.bfloat16),
                   jax.ShapeDtypeStruct((n * ns * mt, 8, cout), jnp.float32),
                   jax.ShapeDtypeStruct((n * ns * mt, 8, cout), jnp.float32)),
        grid_spec=pltpu.PrefetchScalarGridSpec(
            num_scalar_prefetch=0,
            grid=grid,
            in_specs=[
                pl.BlockSpec((1, pr_total, pc_total, c), planes_map),
                pl.BlockSpec((nt, c, tn), w_map),
            ],
            out_specs=(
                pl.BlockSpec((th * q, tn), y_map),
                pl.BlockSpec((1, 8, tn), st_map),
                pl.BlockSpec((1, 8, tn), st_map),
            ),
        ),
        compiler_params=pltpu.CompilerParams(
            dimension_semantics=("parallel", "parallel", "parallel", "parallel"),
            vmem_limit_bytes=_CONV_VMEM_LIMIT),
    )(planes, wstack)
    return y, ps, pq


# ----------------------------------------------------------------------------
# Pallas kernel 2: BatchNorm (precomputed mean / inv-std) + ReLU, bf16 out
# ----------------------------------------------------------------------------
def _bn_relu_kernel(x_ref, mean_ref, inv_ref, o_ref):
    x = x_ref[...].astype(jnp.float32)
    o_ref[...] = jnp.maximum((x - mean_ref[...]) * inv_ref[...], 0.0).astype(o_ref.dtype)


def _batchnorm_relu(y2d, ps, pq, count, *, eps=1e-5, out_dtype=jnp.bfloat16):
    m, c = y2d.shape
    tot = jnp.sum(ps[:, 0, :], axis=0)
    totsq = jnp.sum(pq[:, 0, :], axis=0)
    mean = tot / count
    var = jnp.maximum(totsq / count - mean * mean, 0.0)   # clamp before rsqrt
    inv = jax.lax.rsqrt(var + eps)

    # Lane-dense view for small channel counts: the per-channel pattern repeats
    # every c lanes, so tile mean/inv to 128 lanes and fold rows accordingly.
    rep = (128 // c) if (c < 128 and 128 % c == 0) else 1
    if rep > 1 and m % rep == 0:
        x2 = y2d.reshape(m // rep, 128)
        mean2 = jnp.tile(mean, rep).reshape(1, 128)
        inv2 = jnp.tile(inv, rep).reshape(1, 128)
    else:
        x2 = y2d
        mean2 = mean.reshape(1, c)
        inv2 = inv.reshape(1, c)

    rows, cols = x2.shape
    tm = math.gcd(rows, 4096)
    out = pl.pallas_call(
        _bn_relu_kernel,
        out_shape=jax.ShapeDtypeStruct((rows, cols), out_dtype),
        grid_spec=pltpu.PrefetchScalarGridSpec(
            num_scalar_prefetch=0,
            grid=(rows // tm,),
            in_specs=[pl.BlockSpec((tm, cols), lambda i: (i, 0)),
                      pl.BlockSpec((1, cols), lambda i: (0, 0)),
                      pl.BlockSpec((1, cols), lambda i: (0, 0))],
            out_specs=pl.BlockSpec((tm, cols), lambda i: (i, 0))),
        compiler_params=pltpu.CompilerParams(dimension_semantics=("parallel",)),
    )(x2, mean2, inv2)
    return out.reshape(m, c)


# ----------------------------------------------------------------------------
# Conv / ConvTranspose building blocks (JAX glue: pad + phase split, no im2col
# except the lane-packed C=3 stem)
# ----------------------------------------------------------------------------
def conv_bn_relu(h_nhwc, w_oihw):
    """Conv2d(k=4, s=2, p=1, bias=False) -> BatchNorm2d(train stats) -> ReLU."""
    n, hh, ww, cin = h_nhwc.shape
    cout = w_oihw.shape[0]
    oh, ow = hh // 2, ww // 2
    x = h_nhwc.astype(jnp.bfloat16)
    xp = jnp.pad(x, ((0, 0), (1, 1), (1, 1), (0, 0)))
    if cin <= 4:
        # Stem: pack the 4x4 taps into the contraction dim (K = 16*cin) so the
        # resident slab is lane-dense (no ~50x VMEM lane padding for C=3).
        cols = [xp[:, a:a + 2 * oh:2, b:b + 2 * ow:2, :]
                for a in range(4) for b in range(4)]
        planes = jnp.concatenate(cols, axis=-1)                      # (n, oh, ow, 16*cin)
        wmat = jnp.transpose(w_oihw, (2, 3, 1, 0)).reshape(16 * cin, cout)
        wstack = wmat[None].astype(jnp.bfloat16)                     # (1, 16*cin, cout)
        taps = [(0, 0, 0)]
        plane_rows = oh
    else:
        # 4 stride-2 phase planes of the padded input, each (n, oh+1, ow+1, cin)
        planes = jnp.concatenate(
            [xp[:, py::2, px::2, :] for py in (0, 1) for px in (0, 1)], axis=1)
        taps, ws = [], []
        for py in (0, 1):
            for px in (0, 1):
                for dy in (0, 1):
                    for dx in (0, 1):
                        taps.append((2 * py + px, dy, dx))
                        ws.append(jnp.transpose(w_oihw[:, :, 2 * dy + py, 2 * dx + px]))
        wstack = jnp.stack(ws, axis=0).astype(jnp.bfloat16)          # (16, cin, cout)
        plane_rows = oh + 1
    y, ps, pq = _conv_taps_call(planes, wstack, taps, n=n, ns=1, r=oh, q=ow,
                                cout=cout, transpose_mode=False, plane_rows=plane_rows)
    a = _batchnorm_relu(y, ps, pq, float(n * oh * ow))               # (n*oh*ow, cout) bf16
    return a.reshape(n, oh, ow, cout)


def convt_bn_relu(h_nhwc, w_iohw):
    """ConvTranspose2d(k=4, s=2, p=1, bias=False) -> BatchNorm2d -> ReLU.
    Phase decomposition: each of the 4 output phases is a dense 2x2 conv over a
    shifted window of the (pad-1) input.  Only the column shift is materialized
    (2 stacked copies); the row shift is resolved in-kernel from program_id."""
    n, hh, ww, cin = h_nhwc.shape
    cout = w_iohw.shape[1]
    x = h_nhwc.astype(jnp.bfloat16)
    xp = jnp.pad(x, ((0, 0), (1, 1), (1, 1), (0, 0)))                # (n, hh+2, ww+2, cin)
    planes = jnp.concatenate(
        [xp[:, :, 0:ww + 1, :], xp[:, :, 1:ww + 2, :]], axis=1)     # (n, 2*(hh+2), ww+1, cin)
    taps = [(ty, tx) for ty in (0, 1) for tx in (0, 1)]
    ws = []
    for sy in (0, 1):
        for sx in (0, 1):
            for ty in (0, 1):
                for tx in (0, 1):
                    ws.append(w_iohw[:, :, 3 - sy - 2 * ty, 3 - sx - 2 * tx])
    wstack = jnp.stack(ws, axis=0).astype(jnp.bfloat16)              # (16, cin, cout)
    y, ps, pq = _conv_taps_call(planes, wstack, taps, n=n, ns=4, r=hh, q=ww,
                                cout=cout, transpose_mode=True, plane_rows=hh + 2)
    a = _batchnorm_relu(y, ps, pq, float(n * 4 * hh * ww))           # (n*4*hh*ww, cout) bf16
    a6 = a.reshape(n, 2, 2, hh, ww, cout)
    return jnp.transpose(a6, (0, 3, 1, 4, 2, 5)).reshape(n, 2 * hh, 2 * ww, cout)


# ----------------------------------------------------------------------------
# Pallas kernel 3: tiled matmul (+ bias) for the FC layers and the 1x1 ConvT
# ----------------------------------------------------------------------------
def _matmul_bias_kernel(a_ref, b_ref, bias_ref, o_ref, acc_ref):
    k = pl.program_id(2)

    @pl.when(k == 0)
    def _():
        acc_ref[...] = jnp.zeros_like(acc_ref)

    acc_ref[...] += jnp.dot(a_ref[...], b_ref[...],
                            preferred_element_type=jnp.float32)

    @pl.when(k == pl.num_programs(2) - 1)
    def _():
        o_ref[...] = (acc_ref[...] + bias_ref[...]).astype(o_ref.dtype)


def matmul_bias(a, b, bias=None):
    """(M, K) @ (K, N) + bias; bf16 operands / f32 accumulation.
    N is padded to a lane-dense multiple of 128; large tk/tn keep the grid tiny."""
    m, k = a.shape
    k2, nn = b.shape
    assert k == k2
    if bias is None:
        bias = jnp.zeros((nn,), jnp.float32)

    np_ = max(128, _round_up(nn, 128))
    if np_ <= 512:
        tn = np_
    else:
        tn = 128
        for cand in (4096, 2048, 1024, 512, 256):
            if np_ % cand == 0:
                tn = cand
                break
    if k <= 4096:
        tk = k
    else:
        tk = 128
        for cand in (4096, 2048, 1024, 512, 256):
            if k % cand == 0:
                tk = cand
                break
    kp = _round_up(k, tk)
    tm = min(_round_up(m, 8), 4096)
    while tm > 8 and (tm * tk * 2 + tm * tn * 4) > (6 << 20):
        tm = _round_up(tm // 2, 8)
    mp = _round_up(m, tm)

    a_p = a.astype(jnp.bfloat16)
    if (mp, kp) != (m, k):
        a_p = jnp.pad(a_p, ((0, mp - m), (0, kp - k)))
    b_p = b.astype(jnp.bfloat16)
    if (kp, np_) != (k, nn):
        b_p = jnp.pad(b_p, ((0, kp - k), (0, np_ - nn)))
    bias_p = bias.astype(jnp.float32)
    if np_ != nn:
        bias_p = jnp.pad(bias_p, (0, np_ - nn))
    bias_p = bias_p.reshape(1, np_)

    out = pl.pallas_call(
        _matmul_bias_kernel,
        out_shape=jax.ShapeDtypeStruct((mp, np_), jnp.float32),
        grid_spec=pltpu.PrefetchScalarGridSpec(
            num_scalar_prefetch=0,
            grid=(mp // tm, np_ // tn, kp // tk),
            in_specs=[pl.BlockSpec((tm, tk), lambda i, j, kk: (i, kk)),
                      pl.BlockSpec((tk, tn), lambda i, j, kk: (kk, j)),
                      pl.BlockSpec((1, tn), lambda i, j, kk: (0, j))],
            out_specs=pl.BlockSpec((tm, tn), lambda i, j, kk: (i, j)),
            scratch_shapes=[pltpu.VMEM((tm, tn), jnp.float32)]),
        compiler_params=pltpu.CompilerParams(
            dimension_semantics=("parallel", "parallel", "arbitrary")),
    )(a_p, b_p, bias_p)
    if (mp, np_) != (m, nn):
        out = out[:m, :nn]
    return out


# ----------------------------------------------------------------------------
# Deterministic parameter init (shapes from VAEimage.__init__, FC weights
# pre-transposed to (K, N); fc_mu / fc_logvar fused along N)
# ----------------------------------------------------------------------------
def init_params(key, z_dim=32, nc=3):
    ks = jax.random.split(key, 16)
    p = {}
    enc = [(nc, 32), (32, 64), (64, 128), (128, 256), (256, 512), (512, 1024)]
    p['enc_convs'] = [
        (2.0 / (cin * 16)) ** 0.5
        * jax.random.normal(ks[i], (cout, cin, 4, 4), jnp.float32)
        for i, (cin, cout) in enumerate(enc)]
    feat = 1024 * 4 * 4
    p['fc_w'] = (2.0 / feat) ** 0.5 * jax.random.normal(ks[6], (feat, 2 * z_dim),
                                                        jnp.float32)   # [mu | logvar]
    p['fc_b'] = jnp.zeros((2 * z_dim,), jnp.float32)
    p['dec_fc_w'] = (2.0 / z_dim) ** 0.5 * jax.random.normal(ks[7], (z_dim, feat),
                                                             jnp.float32)
    p['dec_fc_b'] = jnp.zeros((feat,), jnp.float32)
    dec = [(1024, 512), (512, 256), (256, 128), (128, 64), (64, 32), (32, 16)]
    p['dec_convts'] = [
        (1.0 / (cin * 16)) ** 0.5
        * jax.random.normal(ks[8 + i], (cin, cout, 4, 4), jnp.float32)
        for i, (cin, cout) in enumerate(dec)]
    p['dec_out_w'] = (1.0 / 16 ** 0.5) * jax.random.normal(ks[14], (16, nc, 1, 1),
                                                           jnp.float32)
    p['dec_out_b'] = jnp.zeros((nc,), jnp.float32)
    return p


# ----------------------------------------------------------------------------
# Full forward pass (matches VAEimage.forward, train-mode BatchNorm statistics)
# ----------------------------------------------------------------------------
@jax.jit
def vae_forward(params, x_nchw, eps_key):
    n = x_nchw.shape[0]
    z_dim = params['fc_b'].shape[0] // 2
    h = jnp.transpose(x_nchw.astype(jnp.float32), (0, 2, 3, 1))       # NHWC

    # ---- encoder ----
    for w in params['enc_convs']:
        h = conv_bn_relu(h, w)

    # View((-1, 1024*4*4)) flattens NCHW
    z_feat = jnp.transpose(h, (0, 3, 1, 2)).reshape(n, -1)            # (N, 16384) bf16

    stats = matmul_bias(z_feat, params['fc_w'], params['fc_b'])       # fused mu|logvar
    mu, logvar = stats[:, :z_dim], stats[:, z_dim:]

    # reparameterize (tiny tensor -> plain jnp, no kernel launch)
    eps = jax.random.normal(eps_key, mu.shape, jnp.float32)
    z = eps * jnp.exp(0.5 * logvar) + mu

    # ---- decoder ----
    hdec = matmul_bias(z, params['dec_fc_w'], params['dec_fc_b'])     # (N, 16384)
    h = jnp.transpose(hdec.reshape(n, 1024, 4, 4), (0, 2, 3, 1))      # NHWC (N,4,4,1024)

    for w in params['dec_convts']:
        h = convt_bn_relu(h, w)

    # final ConvTranspose2d(16, nc, 1) with bias == per-pixel linear -> matmul
    hh, ww, cl = h.shape[1], h.shape[2], h.shape[3]
    y = matmul_bias(h.reshape(n * hh * ww, cl),
                    params['dec_out_w'][:, :, 0, 0], params['dec_out_b'])
    x_recon = jnp.transpose(y.reshape(n, hh, ww, -1), (0, 3, 1, 2))   # NCHW
    return x_recon, z, mu, logvar


# ----------------------------------------------------------------------------
# Pure-JAX references for the conv building blocks (bf16-rounded operands)
# ----------------------------------------------------------------------------
def _bn_relu_ref(y_nhwc, eps=1e-5):
    mean = jnp.mean(y_nhwc, axis=(0, 1, 2))
    var = jnp.var(y_nhwc, axis=(0, 1, 2))
    return jnp.maximum((y_nhwc - mean) * jax.lax.rsqrt(var + eps), 0.0)


def _conv_bn_relu_ref(x_nhwc, w_oihw):
    xb = x_nhwc.astype(jnp.bfloat16).astype(jnp.float32)
    wb = w_oihw.astype(jnp.bfloat16).astype(jnp.float32)
    y = jax.lax.conv_general_dilated(
        jnp.transpose(xb, (0, 3, 1, 2)), wb, window_strides=(2, 2),
        padding=((1, 1), (1, 1)), dimension_numbers=("NCHW", "OIHW", "NCHW"))
    return _bn_relu_ref(jnp.transpose(y, (0, 2, 3, 1)))


def _convt_bn_relu_ref(x_nhwc, w_iohw):
    xb = x_nhwc.astype(jnp.bfloat16).astype(jnp.float32)
    wb = w_iohw.astype(jnp.bfloat16).astype(jnp.float32)
    w_conv = jnp.transpose(wb, (1, 0, 2, 3))[:, :, ::-1, ::-1]        # (O, I, kh, kw) flipped
    y = jax.lax.conv_general_dilated(
        jnp.transpose(xb, (0, 3, 1, 2)), w_conv, window_strides=(1, 1),
        padding=((2, 2), (2, 2)), lhs_dilation=(2, 2),
        dimension_numbers=("NCHW", "OIHW", "NCHW"))
    return _bn_relu_ref(jnp.transpose(y, (0, 2, 3, 1)))


if __name__ == "__main__":
    key = jax.random.PRNGKey(0)
    (k_param, k_x, k_eps,
     k_c1, k_w1, k_c2, k_w2, k_c3, k_w3) = jax.random.split(key, 9)

    # ---- numerical sanity checks of the Pallas conv building blocks ----
    xs = jax.random.normal(k_c1, (2, 16, 16, 3), jnp.float32)
    wsm = 0.2 * jax.random.normal(k_w1, (32, 3, 4, 4), jnp.float32)
    err = jnp.max(jnp.abs(conv_bn_relu(xs, wsm).astype(jnp.float32)
                          - _conv_bn_relu_ref(xs, wsm)))
    assert float(err) < 0.1, f"stem conv mismatch: {float(err)}"

    xg = jax.random.normal(k_c2, (2, 8, 8, 32), jnp.float32)
    wg = 0.1 * jax.random.normal(k_w2, (64, 32, 4, 4), jnp.float32)
    err = jnp.max(jnp.abs(conv_bn_relu(xg, wg).astype(jnp.float32)
                          - _conv_bn_relu_ref(xg, wg)))
    assert float(err) < 0.1, f"tap conv mismatch: {float(err)}"

    xt = jax.random.normal(k_c3, (2, 8, 8, 32), jnp.float32)
    wt = 0.1 * jax.random.normal(k_w3, (32, 16, 4, 4), jnp.float32)
    err = jnp.max(jnp.abs(convt_bn_relu(xt, wt).astype(jnp.float32)
                          - _convt_bn_relu_ref(xt, wt)))
    assert float(err) < 0.1, f"conv-transpose mismatch: {float(err)}"

    # ---- full VAEimage forward ----
    Z_DIM, NC, BATCH = 32, 3, 2
    # Input spatial size 256 is implied by View((-1, 1024*4*4)) after 6 stride-2 convs.
    x = jax.random.normal(k_x, (BATCH, NC, 256, 256), jnp.float32)
    params = init_params(k_param, z_dim=Z_DIM, nc=NC)

    x_recon, z, mu, logvar = vae_forward(params, x, k_eps)
    jax.block_until_ready((x_recon, z, mu, logvar))

    assert x_recon.shape == (BATCH, NC, 256, 256)
    assert z.shape == (BATCH, Z_DIM)
    assert mu.shape == (BATCH, Z_DIM)
    assert logvar.shape == (BATCH, Z_DIM)
    assert bool(jnp.all(jnp.isfinite(x_recon)))
    print("KERNEL_OK")
</pallas_src>

<mosaic_0001>
module attributes {stable_mosaic.version = 11 : i64} {
  func.func @_conv_tap_kernel(%arg0: i32, %arg1: i32, %arg2: i32, %arg3: i32, %arg4: memref<1x8x8x48xbf16, #tpu.memory_space<vmem>>, %arg5: memref<1x48x32xbf16, #tpu.memory_space<vmem>>, %arg6: memref<64x32xbf16, #tpu.memory_space<vmem>>, %arg7: memref<1x8x32xf32, #tpu.memory_space<vmem>>, %arg8: memref<1x8x32xf32, #tpu.memory_space<vmem>>) attributes {dimension_semantics = [#tpu.dimension_semantics<parallel>, #tpu.dimension_semantics<parallel>, #tpu.dimension_semantics<parallel>, #tpu.dimension_semantics<parallel>], iteration_bounds = array<i64: 1, 1, 2, 1>, scalar_prefetch = 0 : i64, scratch_operands = 0 : i64, tpu.core_type = #tpu.core_type<tc>, window_params = [{transform_indices = @transform_0, window_bounds = array<i64: 1, 8, 8, 48>}, {transform_indices = @transform_1, window_bounds = array<i64: 1, 48, 32>}, {transform_indices = @transform_2, window_bounds = array<i64: 64, 32>}, {transform_indices = @transform_3, window_bounds = array<i64: 1, 8, 32>}, {transform_indices = @transform_4, window_bounds = array<i64: 1, 8, 32>}]} {
    %c8_i32 = arith.constant 8 : i32
    %0 = arith.muli %arg3, %c8_i32 : i32
    %c0_i32 = arith.constant 0 : i32
    %1 = arith.addi %c0_i32, %0 : i32
    %c0_i32_0 = arith.constant 0 : i32
    %2 = arith.addi %1, %c0_i32_0 : i32
    %c0 = arith.constant 0 : index
    %3 = arith.index_cast %2 : i32 to index
    %c0_1 = arith.constant 0 : index
    %c0_2 = arith.constant 0 : index
    %4 = vector.load %arg4[%c0, %3, %c0_1, %c0_2] : memref<1x8x8x48xbf16, #tpu.memory_space<vmem>>, vector<1x8x8x48xbf16>
    %5 = vector.shape_cast %4 : vector<1x8x8x48xbf16> to vector<8x8x48xbf16>
    %6 = vector.shape_cast %5 : vector<8x8x48xbf16> to vector<64x48xbf16>
    %c0_3 = arith.constant 0 : index
    %c0_4 = arith.constant 0 : index
    %c0_5 = arith.constant 0 : index
    %7 = vector.load %arg5[%c0_3, %c0_4, %c0_5] : memref<1x48x32xbf16, #tpu.memory_space<vmem>>, vector<1x48x32xbf16>
    %8 = vector.shape_cast %7 : vector<1x48x32xbf16> to vector<48x32xbf16>
    %cst = arith.constant dense<0.000000e+00> : vector<64x32xf32>
    %9 = tpu.matmul %6, %8, %cst {dimension_numbers = #tpu.dot_dimension_numbers<[1], [0], [0], [1], [0, 0, 1, 1], [], []>} : vector<64x48xbf16>, vector<48x32xbf16>, vector<64x32xf32> -> vector<64x32xf32>
    %cst_6 = arith.constant dense<0.000000e+00> : vector<32xf32>
    %10 = vector.multi_reduction <add>, %9, %cst_6 [0] : vector<64x32xf32> to vector<32xf32>
    %11 = vector.shape_cast %10 : vector<32xf32> to vector<1x32xf32>
    %12 = vector.shape_cast %11 : vector<1x32xf32> to vector<1x1x32xf32>
    %13 = vector.broadcast %12 : vector<1x1x32xf32> to vector<1x8x32xf32>
    %c0_7 = arith.constant 0 : index
    %c0_8 = arith.constant 0 : index
    %c0_9 = arith.constant 0 : index
    %14 = vector.load %arg7[%c0_7, %c0_8, %c0_9] : memref<1x8x32xf32, #tpu.memory_space<vmem>>, vector<1x8x32xf32>
    tpu.vector_store %arg7[%c0_7, %c0_8, %c0_9], %13 {strides = array<i32>} : memref<1x8x32xf32, #tpu.memory_space<vmem>>, vector<1x8x32xf32>,
    %15 = arith.mulf %9, %9 : vector<64x32xf32>
    %cst_10 = arith.constant dense<0.000000e+00> : vector<32xf32>
    %16 = vector.multi_reduction <add>, %15, %cst_10 [0] : vector<64x32xf32> to vector<32xf32>
    %17 = vector.shape_cast %16 : vector<32xf32> to vector<1x32xf32>
    %18 = vector.shape_cast %17 : vector<1x32xf32> to vector<1x1x32xf32>
    %19 = vector.broadcast %18 : vector<1x1x32xf32> to vector<1x8x32xf32>
    %c0_11 = arith.constant 0 : index
    %c0_12 = arith.constant 0 : index
    %c0_13 = arith.constant 0 : index
    %20 = vector.load %arg8[%c0_11, %c0_12, %c0_13] : memref<1x8x32xf32, #tpu.memory_space<vmem>>, vector<1x8x32xf32>
    tpu.vector_store %arg8[%c0_11, %c0_12, %c0_13], %19 {strides = array<i32>} : memref<1x8x32xf32, #tpu.memory_space<vmem>>, vector<1x8x32xf32>,
    %21 = arith.truncf %9 : vector<64x32xf32> to vector<64x32xbf16>
    %c0_14 = arith.constant 0 : index
    %c0_15 = arith.constant 0 : index
    %22 = vector.load %arg6[%c0_14, %c0_15] : memref<64x32xbf16, #tpu.memory_space<vmem>>, vector<64x32xbf16>
    tpu.vector_store %arg6[%c0_14, %c0_15], %21 {strides = array<i32>} : memref<64x32xbf16, #tpu.memory_space<vmem>>, vector<64x32xbf16>,
    return
  }
  func.func @transform_0(%arg0: i32, %arg1: i32, %arg2: i32, %arg3: i32) -> (i32, i32, i32, i32) {
    %c0_i32 = arith.constant 0 : i32
    %c0_i32_0 = arith.constant 0 : i32
    %c0_i32_1 = arith.constant 0 : i32
    %c0_i32_2 = arith.constant 0 : i32
    return %arg2, %c0_i32, %c0_i32_0, %c0_i32_1 : i32, i32, i32, i32
  }
  func.func @transform_1(%arg0: i32, %arg1: i32, %arg2: i32, %arg3: i32) -> (i32, i32, i32) {
    %c0_i32 = arith.constant 0 : i32
    %c0_i32_0 = arith.constant 0 : i32
    return %arg0, %c0_i32, %arg1 : i32, i32, i32
  }
  func.func @transform_2(%arg0: i32, %arg1: i32, %arg2: i32, %arg3: i32) -> (i32, i32) {
    %c1_i32 = arith.constant 1 : i32
    %0 = arith.muli %arg2, %c1_i32 : i32
    %1 = arith.addi %0, %arg0 : i32
    %c1_i32_0 = arith.constant 1 : i32
    %2 = arith.muli %1, %c1_i32_0 : i32
    %3 = arith.addi %2, %arg3 : i32
    %c0_i32 = arith.constant 0 : i32
    return %3, %arg1 : i32, i32
  }
  func.func @transform_3(%arg0: i32, %arg1: i32, %arg2: i32, %arg3: i32) -> (i32, i32, i32) {
    %c1_i32 = arith.constant 1 : i32
    %0 = arith.muli %arg2, %c1_i32 : i32
    %1 = arith.addi %0, %arg0 : i32
    %c1_i32_0 = arith.constant 1 : i32
    %2 = arith.muli %1, %c1_i32_0 : i32
    %3 = arith.addi %2, %arg3 : i32
    %c0_i32 = arith.constant 0 : i32
    %c0_i32_1 = arith.constant 0 : i32
    return %3, %c0_i32, %arg1 : i32, i32, i32
  }
  func.func @transform_4(%arg0: i32, %arg1: i32, %arg2: i32, %arg3: i32) -> (i32, i32, i32) {
    %c1_i32 = arith.constant 1 : i32
    %0 = arith.muli %arg2, %c1_i32 : i32
    %1 = arith.addi %0, %arg0 : i32
    %c1_i32_0 = arith.constant 1 : i32
    %2 = arith.muli %1, %c1_i32_0 : i32
    %3 = arith.addi %2, %arg3 : i32
    %c0_i32 = arith.constant 0 : i32
    %c0_i32_1 = arith.constant 0 : i32
    return %3, %c0_i32, %arg1 : i32, i32, i32
  }
}

</mosaic_0001>

<llo_original>
// kernel: tpu_custom_call.1
$region0: #{tpu_custom_call.1}
  #allocation0 [shape = 'u32[]', space=smem, size = 0x4, offset = 0x4, fixed_abs, tag = 'smem constant byte address 0x4 - core index']
  #allocation1 [shape = 'u32[144,128]{1,0:T(1,128)}', space=vmem, size = 0x12000, scoped, tag = 'internal scratch']
  %s0 = inlined_call_operand.hbm [shape: bf16[2,8,8,48], index: 0, kind: input, shape index: {}]
  %s1 = inlined_call_operand.vmem [shape: bf16[1,48,32], index: 1, kind: input, shape index: {}]
  %s2 = inlined_call_operand.vmem [shape: bf16[128,32], index: 2, kind: output, shape index: {0}]
  %s3 = inlined_call_operand.hbm [shape: f32[2,8,32], index: 3, kind: output, shape index: {1}]
  %s4 = inlined_call_operand.hbm [shape: f32[2,8,32], index: 4, kind: output, shape index: {2}]
  %5 = xla_tuple %s2, %s3, %s4
  %s6 = sld [smem:[#allocation0]]
  $region61: #{tpu_custom_call.1} parent=0
    _
  %s8 = ssub.s32 1, %s6
  %s9 = scalar_select 0, %s8, %s6
  $region1: #{tpu_custom_call.1} parent=0
    #allocation2 [shape = 'u8[32768]{0}', space=vmem, size = 0x8000, scoped, tag = 'input window, operand 0']
    #allocation3 [shape = 's32[2]{0}', space=sflag, size = 0x8, scoped, tag = 'scoped memory for tpu_custom_call.1']
    #allocation4 [shape = 's32[2]{0}', space=sflag, size = 0x8, scoped, tag = 'scoped memory for tpu_custom_call.1']
    #allocation5 [shape = 'u8[8192]{0}', space=vmem, size = 0x2000, scoped, tag = 'output window, operand 1']
    #allocation6 [shape = 'u8[8192]{0}', space=vmem, size = 0x2000, scoped, tag = 'output window, operand 2']
    #allocation7 [shape = 's32[2]{0}', space=sflag, size = 0x8, scoped, tag = 'scoped memory for tpu_custom_call.1']
    %10 = vsyncpa [#allocation3], 0
    %s11 = scalar_lea.sflag [#allocation3], 1
    %12 = vsyncpa %s11, 0
    %13 = vsyncpa [#allocation4], 0
    %s14 = scalar_lea.sflag [#allocation4], 1
    %15 = vsyncpa %s14, 0
    %16 = vsyncpa [#allocation7], 0
    %s17 = scalar_lea.sflag [#allocation7], 1
    %18 = vsyncpa %s17, 0
    loop: start=0, step=1, limit=4
    $region2: #{tpu_custom_call.1} parent=1 // loop_pre_header
      _
    $region3: #{tpu_custom_call.1} parent=1 // loop_header
      %s20 = sphi 0, %s24
      %p21 = scmp.ge.s32.totalorder %s20, 4
      %s27 = sphi 0, %s53
      %s28 = sphi 0, %s49
      %s29 = sphi 0, %s45
      %s30 = sphi 0, %s41
      %s31 = sphi 0, %s27
      %s32 = sphi 0, %s28
      %s33 = sphi 0, %s29
      %s34 = sphi 0, %s30
      %s35 = sphi 0, %s31
      %s36 = sphi 0, %s32
      %s37 = sphi 0, %s33
      %s38 = sphi 0, %s34
      %s56 = sphi 0, %s58
      %s59 = sphi 0, %s56
      %s60 = sphi 0, %s59
      %s76 = sphi 0, %s60
      %s84 = sphi 0, %s86
      %s87 = sphi 0, %s84
      %s88 = sphi 0, %s87
      %s104 = sphi 0, %s88
      %s116 = sphi 0, %s118
      %s119 = sphi 0, %s116
      %s120 = sphi 0, %s119
      %s136 = sphi 0, %s120
      %s148 = sphi 0, %s150
      %s151 = sphi 0, %s148
      %s152 = sphi 0, %s151
      %s168 = sphi 0, %s152
      %s180 = sphi 0, %s182
      %s183 = sphi 0, %s180
      %s184 = sphi 0, %s183
      %s200 = sphi 0, %s184
    $region4: #{tpu_custom_call.1} parent=1 // loop_header_branch
      %23 = sbr.rel (%p21) target = $region8
    $region5: #{tpu_custom_call.1} parent=1 // loop_body
      %s25 = ssub.s32 %s20, 1
      %s26 = ssub.s32 %s20, 2
      %s39 = sadd.s32 1, %s30
      %p40 = scmp.ge.s32.totalorder %s39, 1
      %s41 = scalar_select %p40, 0, %s39
      %s42 = sadd.s32 1, %s29
      %s43 = scalar_select %p40, %s42, %s29
      %p44 = scmp.ge.s32.totalorder %s43, 2
      %s45 = scalar_select %p44, 0, %s43
      %s46 = sadd.s32 1, %s28
      %s47 = scalar_select %p44, %s46, %s28
      %p48 = scmp.ge.s32.totalorder %s47, 1
      %s49 = scalar_select %p48, 0, %s47
      %s50 = sadd.s32 1, %s27
      %s51 = scalar_select %p48, %s50, %s27
      %p52 = scmp.ge.s32.totalorder %s51, 1
      %s53 = scalar_select %p52, 0, %s51
      %s54 = ssub.s32 %s29, %s45
      %p55 = scmp.eq.s32.totalorder %s54, 0
      %s57 = sadd.s32 %s56, 1
      %s58 = scalar_select %p55, %s56, %s57
      %p61 = pneg %p55
      %p62 = scmp.eq.s32.totalorder %s20, 1
      %p63 = por %p61, %p62
      %p64 = scmp.ne.s32.totalorder %s56, %s59
      %p65 = scmp.eq.s32.totalorder %s20, 0
      %p66 = por %p64, %p65
      %p67 = scmp.ne.s32.totalorder %s56, %s59
      %p68 = scmp.eq.s32.totalorder %s25, 1
      %p69 = por %p67, %p68
      %p70 = scmp.ne.s32.totalorder %s59, %s60
      %p71 = scmp.eq.s32.totalorder %s25, 0
      %p72 = por %p70, %p71
      %p73 = scmp.ne.s32.totalorder %s59, %s60
      %p74 = scmp.eq.s32.totalorder %s26, 1
      %p75 = por %p73, %p74
      %p77 = scmp.ne.s32.totalorder %s60, %s76
      %p78 = scmp.eq.s32.totalorder %s26, 0
      %p79 = por %p77, %p78
      %s80 = ssub.s32 %s27, %s53
      %s81 = ssub.s32 %s28, %s49
      %s82 = sor.u32 %s80, %s81
      %p83 = scmp.eq.s32.totalorder %s82, 0
      %s85 = sadd.s32 %s84, 1
      %s86 = scalar_select %p83, %s84, %s85
      %p89 = pneg %p83
      %p90 = scmp.eq.s32.totalorder %s20, 1
      %p91 = por %p89, %p90
      %p92 = scmp.ne.s32.totalorder %s84, %s87
      %p93 = scmp.eq.s32.totalorder %s20, 0
      %p94 = por %p92, %p93
      %p95 = scmp.ne.s32.totalorder %s84, %s87
      %p96 = scmp.eq.s32.totalorder %s25, 1
      %p97 = por %p95, %p96
      %p98 = scmp.ne.s32.totalorder %s87, %s88
      %p99 = scmp.eq.s32.totalorder %s25, 0
      %p100 = por %p98, %p99
      %p101 = scmp.ne.s32.totalorder %s87, %s88
      %p102 = scmp.eq.s32.totalorder %s26, 1
      %p103 = por %p101, %p102
      %p105 = scmp.ne.s32.totalorder %s88, %s104
      %p106 = scmp.eq.s32.totalorder %s26, 0
      %p107 = por %p105, %p106
      %s108 = sadd.s32 %s29, %s27
      %s109 = sadd.s32 %s108, %s30
      %s110 = sadd.s32 %s45, %s53
      %s111 = sadd.s32 %s110, %s41
      %s112 = ssub.s32 %s109, %s111
      %s113 = ssub.s32 %s28, %s49
      %s114 = sor.u32 %s112, %s113
      %p115 = scmp.eq.s32.totalorder %s114, 0
      %s117 = sadd.s32 %s116, 1
      %s118 = scalar_select %p115, %s116, %s117
      %p121 = pneg %p115
      %p122 = scmp.eq.s32.totalorder %s20, 1
      %p123 = por %p121, %p122
      %p124 = scmp.ne.s32.totalorder %s116, %s119
      %p125 = scmp.eq.s32.totalorder %s20, 0
      %p126 = por %p124, %p125
      %p127 = scmp.ne.s32.totalorder %s116, %s119
      %p128 = scmp.eq.s32.totalorder %s25, 1
      %p129 = por %p127, %p128
      %p130 = scmp.ne.s32.totalorder %s119, %s120
      %p131 = scmp.eq.s32.totalorder %s25, 0
      %p132 = por %p130, %p131
      %p133 = scmp.ne.s32.totalorder %s119, %s120
      %p134 = scmp.eq.s32.totalorder %s26, 1
      %p135 = por %p133, %p134
      %p137 = scmp.ne.s32.totalorder %s120, %s136
      %p138 = scmp.eq.s32.totalorder %s26, 0
      %p139 = por %p137, %p138
      %s140 = sadd.s32 %s29, %s27
      %s141 = sadd.s32 %s140, %s30
      %s142 = sadd.s32 %s45, %s53
      %s143 = sadd.s32 %s142, %s41
      %s144 = ssub.s32 %s141, %s143
      %s145 = ssub.s32 %s28, %s49
      %s146 = sor.u32 %s144, %s145
      %p147 = scmp.eq.s32.totalorder %s146, 0
      %s149 = sadd.s32 %s148, 1
      %s150 = scalar_select %p147, %s148, %s149
      %p153 = pneg %p147
      %p154 = scmp.eq.s32.totalorder %s20, 1
      %p155 = por %p153, %p154
      %p156 = scmp.ne.s32.totalorder %s148, %s151
      %p157 = scmp.eq.s32.totalorder %s20, 0
      %p158 = por %p156, %p157
      %p159 = scmp.ne.s32.totalorder %s148, %s151
      %p160 = scmp.eq.s32.totalorder %s25, 1
      %p161 = por %p159, %p160
      %p162 = scmp.ne.s32.totalorder %s151, %s152
      %p163 = scmp.eq.s32.totalorder %s25, 0
      %p164 = por %p162, %p163
      %p165 = scmp.ne.s32.totalorder %s151, %s152
      %p166 = scmp.eq.s32.totalorder %s26, 1
      %p167 = por %p165, %p166
      %p169 = scmp.ne.s32.totalorder %s152, %s168
      %p170 = scmp.eq.s32.totalorder %s26, 0
      %p171 = por %p169, %p170
      %s172 = sadd.s32 %s29, %s27
      %s173 = sadd.s32 %s172, %s30
      %s174 = sadd.s32 %s45, %s53
      %s175 = sadd.s32 %s174, %s41
      %s176 = ssub.s32 %s173, %s175
      %s177 = ssub.s32 %s28, %s49
      %s178 = sor.u32 %s176, %s177
      %p179 = scmp.eq.s32.totalorder %s178, 0
      %s181 = sadd.s32 %s180, 1
      %s182 = scalar_select %p179, %s180, %s181
      %p185 = pneg %p179
      %p186 = scmp.eq.s32.totalorder %s20, 1
      %p187 = por %p185, %p186
      %p188 = scmp.ne.s32.totalorder %s180, %s183
      %p189 = scmp.eq.s32.totalorder %s20, 0
      %p190 = por %p188, %p189
      %p191 = scmp.ne.s32.totalorder %s180, %s183
      %p192 = scmp.eq.s32.totalorder %s25, 1
      %p193 = por %p191, %p192
      %p194 = scmp.ne.s32.totalorder %s183, %s184
      %p195 = scmp.eq.s32.totalorder %s25, 0
      %p196 = por %p194, %p195
      %p197 = scmp.ne.s32.totalorder %s183, %s184
      %p198 = scmp.eq.s32.totalorder %s26, 1
      %p199 = por %p197, %p198
      %p201 = scmp.ne.s32.totalorder %s184, %s200
      %p202 = scmp.eq.s32.totalorder %s26, 0
      %p203 = por %p201, %p202
      %p204 = scmp.le.s32.totalorder 1, %s20
      %p205 = scmp.lt.s32.totalorder %s20, 3
      %p206 = pnand %p204, %p205
      %p207 = pneg %p206
      // Predicated region
      $region9: #{tpu_custom_call.1} parent=5 // pred_check
        _
      $region10: #{tpu_custom_call.1} parent=5 // pred_check_branch
        %209 = sbr.rel (%p206) target = $region12
      $region11: #{tpu_custom_call.1} parent=5 // pred_region
        %s210 = ssub.s32 %s20, 1
        // Predicated region
        $region13: #{tpu_custom_call.1} parent=11 // pred_check
          %p211 = pneg %p100
        $region14: #{tpu_custom_call.1} parent=11 // pred_check_branch
          %213 = sbr.rel (%p211) target = $region16
        $region15: #{tpu_custom_call.1} parent=11 // pred_region
          %p214 = scmp.lt.s32.totalorder %s31, 0
          %s215 = scalar_select %p214, %s31, 0
          %p216 = scmp.lt.s32.totalorder %s32, 0
          %s217 = scalar_select %p216, %s32, 0
          %s218 = smul.addr %s215, 6
          %s219 = sadd.s32 %s217, %s218
          %s220 = smul.addr %s219, 4
          %s221 = scalar_lea.vmem %s1, %s220
        $region16: #{tpu_custom_call.1} parent=11 // pred_fallthru
          _
      $region12: #{tpu_custom_call.1} parent=5 // pred_fallthru
        _
      %p222 = scmp.lt.s32.totalorder %s20, 2
      // Predicated region
      $region17: #{tpu_custom_call.1} parent=5 // pred_check
        %p223 = pneg %p222
      $region18: #{tpu_custom_call.1} parent=5 // pred_check_branch
        %225 = sbr.rel (%p223) target = $region20
      $region19: #{tpu_custom_call.1} parent=5 // pred_region
        // Predicated region
        $region21: #{tpu_custom_call.1} parent=19 // pred_check
          %p226 = pneg %p66
        $region22: #{tpu_custom_call.1} parent=19 // pred_check_branch
          %228 = sbr.rel (%p226) target = $region24
        $region23: #{tpu_custom_call.1} parent=19 // pred_region
          %s229 = sand.u32 %s56, 1
          %s230 = scalar_lea.sflag [#allocation3], %s229
          %s231 = sand.u32 %s56, 1
          %s232 = smul.addr %s231, 32
          %s233 = scalar_lea.vmem [#allocation2], %s232
          %s235 = ssub.s32 512, 512
          %236 = vsyncadd %s230, %s235
          %s237 = smul.addr %s29, 8
          %s238 = smul.addr %s237, 64
          %s239 = scalar_lea.hbm %s0, %s238
          %s240 = sshll.u32 %s233, 4
          %s241 = int_to_ptr.vmem [resolvable:$true] %s240
          %246 = dma.hbm_to_vmem [thread:$0]  %s239, 512, %s241, %s230, 64, 64, 4
        $region24: #{tpu_custom_call.1} parent=19 // pred_fallthru
          _
      $region20: #{tpu_custom_call.1} parent=5 // pred_fallthru
        _
      %p247 = scmp.le.s32.totalorder 1, %s20
      %p248 = scmp.lt.s32.totalorder %s20, 3
      %p249 = pnand %p247, %p248
      %p250 = pneg %p249
      // Predicated region
      $region25: #{tpu_custom_call.1} parent=5 // pred_check
        _
      $region26: #{tpu_custom_call.1} parent=5 // pred_check_branch
        %252 = sbr.rel (%p249) target = $region28
      $region27: #{tpu_custom_call.1} parent=5 // pred_region
        %s253 = ssub.s32 %s20, 1
        %s254 = sand.u32 %s59, 1
        %s255 = scalar_lea.sflag [#allocation3], %s254
        %s256 = sand.u32 %s59, 1
        %s257 = smul.addr %s256, 32
        %s258 = scalar_lea.vmem [#allocation2], %s257
        // Predicated region
        $region29: #{tpu_custom_call.1} parent=27 // pred_check
          %p259 = pneg %p72
        $region30: #{tpu_custom_call.1} parent=27 // pred_check_branch
          %261 = sbr.rel (%p259) target = $region32
        $region31: #{tpu_custom_call.1} parent=27 // pred_region
          %262 = dma.done %s255, 512
        $region32: #{tpu_custom_call.1} parent=27 // pred_fallthru
          _
        %s263 = sand.u32 %s59, 1
        %s264 = scalar_lea.sflag [#allocation3], %s263
        %s265 = sand.u32 %s59, 1
        %s266 = smul.addr %s265, 32
        %s267 = scalar_lea.vmem [#allocation2], %s266
        %p268 = pneg %p72
        %p269 = pneg %p69
        %p270 = scmp.lt.s32.totalorder %s31, 0
        %s271 = scalar_select %p270, %s31, 0
        %p272 = scmp.lt.s32.totalorder %s32, 0
        %s273 = scalar_select %p272, %s32, 0
        %s274 = smul.addr %s271, 6
        %s275 = sadd.s32 %s273, %s274
        %s276 = smul.addr %s275, 4
        %s277 = scalar_lea.vmem %s1, %s276
        %p278 = pneg %p100
        %p279 = pneg %p97
        %p280 = pneg %p132
        %p281 = pneg %p129
        %s282 = sadd.s32 %s33, %s31
        %s283 = sadd.s32 %s282, %s34
        %s284 = smul.u32 8, %s283
        %p285 = scmp.lt.s32.totalorder %s284, 15
        %s286 = scalar_select %p285, %s284, 15
        %p287 = scmp.lt.s32.totalorder %s32, 0
        %s288 = scalar_select %p287, %s32, 0
        %s289 = sadd.s32 %s288, %s286
        %s290 = smul.addr %s289, 4
        %s291 = scalar_lea.vmem %s2, %s290
        %p292 = pneg %p164
        %p293 = pneg %p161
        %s294 = sand.u32 %s151, 1
        %s295 = scalar_lea.sflag [#allocation4], %s294
        %s296 = sand.u32 %s151, 1
        %s297 = smul.addr %s296, 8
        %s298 = scalar_lea.vmem [#allocation5], %s297
        %p299 = pneg %p196
        %p300 = pneg %p193
        %s301 = sand.u32 %s183, 1
        %s302 = scalar_lea.sflag [#allocation7], %s301
        %s303 = sand.u32 %s183, 1
        %s304 = smul.addr %s303, 8
        %s305 = scalar_lea.vmem [#allocation6], %s304
        %p306 = scmp.lt.s32.totalorder %s31, 0
        %s307 = scalar_select %p306, %s31, 0
        %p308 = scmp.lt.s32.totalorder %s32, 0
        %s309 = scalar_select %p308, %s32, 0
        %s310 = smul.addr %s307, 6
        %s311 = sadd.s32 %s309, %s310
        %s312 = smul.addr %s311, 4
        %s313 = scalar_lea.vmem %s1, %s312
        %s314 = sadd.s32 %s33, %s31
        %s315 = sadd.s32 %s314, %s34
        %s316 = smul.u32 8, %s315
        %p317 = scmp.lt.s32.totalorder %s316, 15
        %s318 = scalar_select %p317, %s316, 15
        %p319 = scmp.lt.s32.totalorder %s32, 0
        %s320 = scalar_select %p319, %s32, 0
        %s321 = sadd.s32 %s320, %s318
        %s322 = smul.addr %s321, 4
        %s323 = scalar_lea.vmem %s2, %s322
        %s324 = sadd.s32 %s33, %s31
        %s325 = sadd.s32 %s324, %s34
        %s326 = smul.u32 8, %s325
        %s327 = sadd.s32 %s33, %s31
        %s328 = sadd.s32 %s327, %s34
        %s329 = sadd.s32 %s33, %s31
        %s330 = sadd.s32 %s329, %s34
        %s332 = smul.u32 %s34, 8
        %s333 = smul.addr %s332, 4
        %s334 = scalar_lea.vmem %s258, %s333 [#allocation2]
        %v335 = vld [vmem:[%s334] sm:$0xf]
        %v336 = vld [vmem:[%s334 + $0x4] sm:$0xf]
        %v337 = vld [vmem:[%s334 + $0x8] sm:$0xf]
        %v338 = vld [vmem:[%s334 + $0xc] sm:$0xf]
        %v339 = vld [vmem:[%s334 + $0x10] sm:$0xf]
        %v340 = vld [vmem:[%s334 + $0x14] sm:$0xf]
        %v341 = vld [vmem:[%s334 + $0x18] sm:$0xf]
        %v342 = vld [vmem:[%s334 + $0x1c] sm:$0xf]
        %v343 = vld [vmem:[%s313] sm:$0xf]
        %v344 = vld [vmem:[%s313 + $0x4] sm:$0xf]
        %v345 = vld [vmem:[%s313 + $0x8] sm:$0xf]
        %v346 = vld [vmem:[%s313 + $0xc] sm:$0xf]
        %v347 = vld [vmem:[%s313 + $0x10] sm:$0xf]
        %v348 = vld [vmem:[%s313 + $0x14] sm:$0xf]
        %v357 = vunpack.c.l.b16 %v335
        %v358 = vunpack.c.l.b16 %v336
        %v359 = vunpack.c.l.b16 %v337
        %v360 = vunpack.c.l.b16 %v338
        %v361 = vunpack.c.l.b16 %v339
        %v362 = vunpack.c.l.b16 %v340
        %v363 = vunpack.c.l.b16 %v341
        %v364 = vunpack.c.l.b16 %v342
        %v365 = vpack.c.b16 %v358, %v357
        %v366 = vpack.c.b16 %v360, %v359
        %v367 = vpack.c.b16 %v362, %v361
        %v368 = vpack.c.b16 %v364, %v363
        %v375 = vunpack.c.l.b16 %v343
        %v376 = vunpack.c.l.b16 %v344
        %v377 = vunpack.c.l.b16 %v345
        %v378 = vunpack.c.l.b16 %v346
        %v379 = vunpack.c.l.b16 %v347
        %v380 = vunpack.c.l.b16 %v348
        %v381 = vpack.c.b16 %v376, %v375
        %v382 = vpack.c.b16 %v378, %v377
        %v383 = vpack.c.b16 %v380, %v379
        %vm387 = vcmask 392192
        %v389 = vsel %vm387, %v365, 0
        %v392 = vsel %vm387, %v366, 0
        %v395 = vsel %vm387, %v367, 0
        %v398 = vsel %vm387, %v368, 0
        %400 = vmatprep.subr.bf16.mxu0 0
        %401 = vmatpush1.bf16.msra.mxu0 %v381
        %402 = vmatprep.subr.bf16.mxu0 0
        %403 = vmatpush1.bf16.msra.mxu0 %v382
        %404 = vmatprep.subr.bf16.mxu0 0
        %405 = vmatpush1.bf16.msra.mxu0 %v383
        %406 = vmatprep.subr.bf16.mxu0 0
        %407 = vmatpush1.bf16.msra.mxu0 0
        %408 = vmatprep.subr.bf16.mxu0 0
        %409 = vmatpush1.bf16.msra.mxu0 0
        %410 = vmatprep.subr.bf16.mxu0 0
        %411 = vmatpush1.bf16.msra.mxu0 0
        %412 = vmatprep.subr.bf16.mxu0 0
        %413 = vmatpush1.bf16.msra.mxu0 0
        %414 = vmatprep.subr.bf16.mxu0 0
        %415 = vmatpush1.bf16.msra.mxu0 0
        %416 = vmatprep.subr.bf16.mxu0 0
        %417 = vmatpush1.bf16.msra.mxu0 0
        %418 = vmatprep.subr.bf16.mxu0 0
        %419 = vmatpush1.bf16.msra.mxu0 0
        %420 = vmatprep.subr.bf16.mxu0 0
        %421 = vmatpush1.bf16.msra.mxu0 0
        %422 = vmatprep.subr.bf16.mxu0 0
        %423 = vmatpush1.bf16.msra.mxu0 0
        %424 = vmatprep.subr.bf16.mxu0 0
        %425 = vmatpush1.bf16.msra.mxu0 0
        %426 = vmatprep.subr.bf16.mxu0 0
        %427 = vmatpush1.bf16.msra.mxu0 0
        %428 = vmatprep.subr.bf16.mxu0 0
        %429 = vmatpush1.bf16.msra.mxu0 0
        %430 = vmatprep.subr.bf16.mxu0 0
        %431 = vmatpush1.bf16.msra.mxu0 0
        %432 = vmatprep.mubr.bf16.mxu0 0
        %433 = vmatmul.mubr.bf16.gmra.mrb[0].mxu0 %v389
        %v434 = vpop.f32.mrb[0].mxu0
        %v435 = vadd.f32 0.0, %v434
        %v436 = vpop.f32.mrb[0].mxu0
        %v437 = vpop.f32.mrb[0].mxu0
        %v438 = vadd.f32 0.0, %v437
        %v439 = vpop.f32.mrb[0].mxu0
        %440 = vmatprep.mubr.bf16.mxu0 0
        %441 = vmatmul.mubr.bf16.gmra.mrb[0].mxu0 %v392
        %v442 = vpop.f32.mrb[0].mxu0
        %v443 = vadd.f32 0.0, %v442
        %v444 = vpop.f32.mrb[0].mxu0
        %v445 = vpop.f32.mrb[0].mxu0
        %v446 = vadd.f32 0.0, %v445
        %v447 = vpop.f32.mrb[0].mxu0
        %448 = vmatprep.mubr.bf16.mxu0 0
        %449 = vmatmul.mubr.bf16.gmra.mrb[0].mxu0 %v395
        %v450 = vpop.f32.mrb[0].mxu0
        %v451 = vadd.f32 0.0, %v450
        %v452 = vpop.f32.mrb[0].mxu0
        %v453 = vpop.f32.mrb[0].mxu0
        %v454 = vadd.f32 0.0, %v453
        %v455 = vpop.f32.mrb[0].mxu0
        %456 = vmatprep.mubr.bf16.mxu0 0
        %457 = vmatmul.mubr.bf16.gmra.mrb[0].mxu0 %v398
        %v458 = vpop.f32.mrb[0].mxu0
        %v459 = vadd.f32 0.0, %v458
        %v460 = vpop.f32.mrb[0].mxu0
        %v461 = vpop.f32.mrb[0].mxu0
        %v462 = vadd.f32 0.0, %v461
        %v463 = vpop.f32.mrb[0].mxu0
        %464 = vdwg.mxu0
        %vm465 = vcmask 261120
        %v466 = vsel %vm465, %v435, 0.0
        %v467 = vsel %vm465, %v438, 0.0
        %v468 = vadd.f32 %v466, %v467
        %v469 = vsel %vm465, %v443, 0.0
        %v470 = vadd.f32 %v468, %v469
        %v471 = vsel %vm465, %v446, 0.0
        %v472 = vadd.f32 %v470, %v471
        %v473 = vsel %vm465, %v451, 0.0
        %v474 = vadd.f32 %v472, %v473
        %v475 = vsel %vm465, %v454, 0.0
        %v476 = vadd.f32 %v474, %v475
        %v477 = vsel %vm465, %v459, 0.0
        %v478 = vadd.f32 %v476, %v477
        %v479 = vsel %vm465, %v462, 0.0
        %v480 = vadd.f32 %v478, %v479
        %v481 = vrot.slane %v480, 4
        %v482 = vadd.f32 %v480, %v481
        %v483 = vrot.slane %v482, 2
        %v484 = vadd.f32 %v482, %v483
        %v485 = vrot.slane %v484, 1
        %v486 = vadd.f32 %v484, %v485
        %487 = vst.msk [vmem:[%s298] sm:$0xff] %vm465, %v486
        %v488 = vmul.f32 %v435, %v435
        %v489 = vmul.f32 %v438, %v438
        %v490 = vmul.f32 %v443, %v443
        %v491 = vmul.f32 %v446, %v446
        %v492 = vmul.f32 %v451, %v451
        %v493 = vmul.f32 %v454, %v454
        %v494 = vmul.f32 %v459, %v459
        %v495 = vmul.f32 %v462, %v462
        %v496 = vsel %vm465, %v488, 0.0
        %v497 = vsel %vm465, %v489, 0.0
        %v498 = vadd.f32 %v496, %v497
        %v499 = vsel %vm465, %v490, 0.0
        %v500 = vadd.f32 %v498, %v499
        %v501 = vsel %vm465, %v491, 0.0
        %v502 = vadd.f32 %v500, %v501
        %v503 = vsel %vm465, %v492, 0.0
        %v504 = vadd.f32 %v502, %v503
        %v505 = vsel %vm465, %v493, 0.0
        %v506 = vadd.f32 %v504, %v505
        %v507 = vsel %vm465, %v494, 0.0
        %v508 = vadd.f32 %v506, %v507
        %v509 = vsel %vm465, %v495, 0.0
        %v510 = vadd.f32 %v508, %v509
        %v511 = vrot.slane %v510, 4
        %v512 = vadd.f32 %v510, %v511
        %v513 = vrot.slane %v512, 2
        %v514 = vadd.f32 %v512, %v513
        %v515 = vrot.slane %v514, 1
        %v516 = vadd.f32 %v514, %v515
        %517 = vst.msk [vmem:[%s305] sm:$0xff] %vm465, %v516
        %v518 = vpack.c.bf16 %v438, %v435
        %v519 = vpack.c.bf16 %v446, %v443
        %v520 = vpack.c.bf16 %v454, %v451
        %v521 = vpack.c.bf16 %v462, %v459
        %v526 = vunpack.c.l.b16 %v518
        %v527 = vunpack.c.h.b16 %v518
        %v528 = vunpack.c.l.b16 %v519
        %v529 = vunpack.c.h.b16 %v519
        %v530 = vunpack.c.l.b16 %v520
        %v531 = vunpack.c.h.b16 %v520
        %v532 = vunpack.c.l.b16 %v521
        %v533 = vunpack.c.h.b16 %v521
        %v534 = vpack.c.b16 %v526, %v526
        %v535 = vpack.c.b16 %v527, %v527
        %v536 = vpack.c.b16 %v528, %v528
        %v537 = vpack.c.b16 %v529, %v529
        %v538 = vpack.c.b16 %v530, %v530
        %v539 = vpack.c.b16 %v531, %v531
        %v540 = vpack.c.b16 %v532, %v532
        %v541 = vpack.c.b16 %v533, %v533
        %vm550 = vcmask 257024
        %551 = vst.msk [vmem:[%s323] sm:$0xf] %vm550, %v534
        %552 = vst.msk [vmem:[%s323 + $0x4] sm:$0xf] %vm550, %v535
        %553 = vst.msk [vmem:[%s323 + $0x8] sm:$0xf] %vm550, %v536
        %554 = vst.msk [vmem:[%s323 + $0xc] sm:$0xf] %vm550, %v537
        %555 = vst.msk [vmem:[%s323 + $0x10] sm:$0xf] %vm550, %v538
        %556 = vst.msk [vmem:[%s323 + $0x14] sm:$0xf] %vm550, %v539
        %557 = vst.msk [vmem:[%s323 + $0x18] sm:$0xf] %vm550, %v540
        %558 = vst.msk [vmem:[%s323 + $0x1c] sm:$0xf] %vm550, %v541
        %s559 = sadd.s32 %s33, %s31
        %s560 = sadd.s32 %s559, %s34
        %s561 = smul.u32 8, %s560
        %p562 = scmp.lt.s32.totalorder %s561, 15
        %s563 = scalar_select %p562, %s561, 15
        %p564 = scmp.lt.s32.totalorder %s32, 0
        %s565 = scalar_select %p564, %s32, 0
        %s566 = sadd.s32 %s565, %s563
        %s567 = smul.addr %s566, 4
        %s568 = scalar_lea.vmem %s2, %s567
        %s569 = sand.u32 %s151, 1
        %s570 = scalar_lea.sflag [#allocation4], %s569
        %s571 = sand.u32 %s151, 1
        %s572 = smul.addr %s571, 8
        %s573 = scalar_lea.vmem [#allocation5], %s572
        %s574 = sand.u32 %s183, 1
        %s575 = scalar_lea.sflag [#allocation7], %s574
        %s576 = sand.u32 %s183, 1
        %s577 = smul.addr %s576, 8
        %s578 = scalar_lea.vmem [#allocation6], %s577
        // Predicated region
        $region33: #{tpu_custom_call.1} parent=27 // pred_check
          %p579 = pneg %p129
        $region34: #{tpu_custom_call.1} parent=27 // pred_check_branch
          %581 = sbr.rel (%p579) target = $region36
        $region35: #{tpu_custom_call.1} parent=27 // pred_region
          %s582 = sadd.s32 %s33, %s31
          %s583 = sadd.s32 %s582, %s34
          %s584 = smul.u32 8, %s583
        $region36: #{tpu_custom_call.1} parent=27 // pred_fallthru
          _
        // Predicated region
        $region37: #{tpu_custom_call.1} parent=27 // pred_check
          %p585 = pneg %p161
        $region38: #{tpu_custom_call.1} parent=27 // pred_check_branch
          %587 = sbr.rel (%p585) target = $region40
        $region39: #{tpu_custom_call.1} parent=27 // pred_region
          %s588 = sadd.s32 %s33, %s31
          %s589 = sadd.s32 %s588, %s34
          %s591 = ssub.s32 128, 128
          %592 = vsyncadd %s570, %s591
          %s593 = sadd.s32 %s32, %s589
          %s594 = smul.addr %s593, 128
          %s595 = scalar_lea.hbm %s3, %s594
          %s597 = sshll.u32 %s573, 4
          %s598 = int_to_ptr.vmem [resolvable:$true] %s597
          %600 = dma.vmem_to_hbm [thread:$0]  %s598, 128, %s595, %s570
        $region40: #{tpu_custom_call.1} parent=27 // pred_fallthru
          _
        // Predicated region
        $region41: #{tpu_custom_call.1} parent=27 // pred_check
          %p601 = pneg %p193
        $region42: #{tpu_custom_call.1} parent=27 // pred_check_branch
          %603 = sbr.rel (%p601) target = $region44
        $region43: #{tpu_custom_call.1} parent=27 // pred_region
          %s604 = sadd.s32 %s33, %s31
          %s605 = sadd.s32 %s604, %s34
          %s607 = ssub.s32 128, 128
          %608 = vsyncadd %s575, %s607
          %s609 = sadd.s32 %s32, %s605
          %s610 = smul.addr %s609, 128
          %s611 = scalar_lea.hbm %s4, %s610
          %s613 = sshll.u32 %s578, 4
          %s614 = int_to_ptr.vmem [resolvable:$true] %s613
          %616 = dma.vmem_to_hbm [thread:$0]  %s614, 128, %s611, %s575
        $region44: #{tpu_custom_call.1} parent=27 // pred_fallthru
          _
      $region28: #{tpu_custom_call.1} parent=5 // pred_fallthru
        _
      %p617 = scmp.le.s32.totalorder 2, %s20
      // Predicated region
      $region45: #{tpu_custom_call.1} parent=5 // pred_check
        %p618 = pneg %p617
      $region46: #{tpu_custom_call.1} parent=5 // pred_check_branch
        %620 = sbr.rel (%p618) target = $region48
      $region47: #{tpu_custom_call.1} parent=5 // pred_region
        %s621 = ssub.s32 %s20, 2
        // Predicated region
        $region49: #{tpu_custom_call.1} parent=47 // pred_check
          %p622 = pneg %p135
        $region50: #{tpu_custom_call.1} parent=47 // pred_check_branch
          %624 = sbr.rel (%p622) target = $region52
        $region51: #{tpu_custom_call.1} parent=47 // pred_region
          %s625 = sadd.s32 %s37, %s35
          %s626 = sadd.s32 %s625, %s38
          %s627 = smul.u32 8, %s626
          %p628 = scmp.lt.s32.totalorder %s627, 15
          %s629 = scalar_select %p628, %s627, 15
          %p630 = scmp.lt.s32.totalorder %s36, 0
          %s631 = scalar_select %p630, %s36, 0
          %s632 = sadd.s32 %s631, %s629
          %s633 = smul.addr %s632, 4
          %s634 = scalar_lea.vmem %s2, %s633
        $region52: #{tpu_custom_call.1} parent=47 // pred_fallthru
          _
        // Predicated region
        $region53: #{tpu_custom_call.1} parent=47 // pred_check
          %p635 = pneg %p167
        $region54: #{tpu_custom_call.1} parent=47 // pred_check_branch
          %637 = sbr.rel (%p635) target = $region56
        $region55: #{tpu_custom_call.1} parent=47 // pred_region
          %s638 = sand.u32 %s152, 1
          %s639 = scalar_lea.sflag [#allocation4], %s638
          %s640 = sand.u32 %s152, 1
          %s641 = smul.addr %s640, 8
          %s642 = scalar_lea.vmem [#allocation5], %s641
          %643 = dma.done %s639, 128
        $region56: #{tpu_custom_call.1} parent=47 // pred_fallthru
          _
        // Predicated region
        $region57: #{tpu_custom_call.1} parent=47 // pred_check
          %p644 = pneg %p199
        $region58: #{tpu_custom_call.1} parent=47 // pred_check_branch
          %646 = sbr.rel (%p644) target = $region60
        $region59: #{tpu_custom_call.1} parent=47 // pred_region
          %s647 = sand.u32 %s184, 1
          %s648 = scalar_lea.sflag [#allocation7], %s647
          %s649 = sand.u32 %s184, 1
          %s650 = smul.addr %s649, 8
          %s651 = scalar_lea.vmem [#allocation6], %s650
          %652 = dma.done %s648, 128
        $region60: #{tpu_custom_call.1} parent=47 // pred_fallthru
          _
      $region48: #{tpu_custom_call.1} parent=5 // pred_fallthru
        _
    $region6: #{tpu_custom_call.1} parent=1 // loop_footer
      %s24 = sadd.s32 1, %s20
    $region7: #{tpu_custom_call.1} parent=1 // loop_footer_branch
      %19 = sbr.rel target = $region3
    $region8: #{tpu_custom_call.1} parent=1 // loop_exit
      _
    %653 = vsyncpa [#allocation3], 1
    %s654 = scalar_lea.sflag [#allocation3], 1
    %655 = vsyncpa %s654, 1
    %656 = vsyncpa [#allocation4], 1
    %s657 = scalar_lea.sflag [#allocation4], 1
    %658 = vsyncpa %s657, 1
    %659 = vsyncpa [#allocation7], 1
    %s660 = scalar_lea.sflag [#allocation7], 1
    %661 = vsyncpa %s660, 1

</llo_original>
